<compile_context>
chip_gen: v5e
topology: v5e:2x2
jax: 0.10.0
libtpu: 0.0.40
codegen_flags: <defaults>
</compile_context>

<pallas_src>
import jax
import jax.numpy as jnp
from jax.experimental import pallas as pl
from jax.experimental.pallas import tpu as pltpu


def _scale_kernel(scale_ref, x_ref, o_ref):
    # scale_ref: (1,) f32 parameter in SMEM
    # x_ref / o_ref: (block_rows, lane_w) tile in VMEM
    prod = x_ref[...].astype(jnp.float32) * scale_ref[0]
    o_ref[...] = prod.astype(o_ref.dtype)


_LANE_CANDIDATES = (2048, 1024, 512, 256, 128)


def _choose_lane_width(total: int):
    """Widest lane-dense (multiple-of-128) last dim that divides `total` exactly."""
    for lane_w in _LANE_CANDIDATES:
        if total % lane_w == 0:
            return lane_w
    return None  # total not a multiple of 128 -> plain-JAX bypass


def scale_forward(x: jax.Array, scale: jax.Array,
                  min_pallas_bytes: int = 256 * 1024) -> jax.Array:
    """out = x * scale (scale is a shape-(1,) f32 parameter, like nn.Parameter([v]))."""
    orig_shape = x.shape
    orig_dtype = x.dtype
    total = int(x.size)
    dtype_bytes = x.dtype.itemsize

    scale_f32 = scale.astype(jnp.float32)
    lane_w = _choose_lane_width(total) if total > 0 else None

    # Bypass: tiny tensors (launch + DMA setup dominates) or totals that are not
    # a multiple of 128 (padding/reassembly would add full-tensor HBM passes;
    # XLA's fused scalar multiply is already a single roofline read+write pass).
    if lane_w is None or total * dtype_bytes < min_pallas_bytes:
        return (x * scale_f32[0]).astype(orig_dtype)

    rows = total // lane_w  # exact; no rounding, no padding

    # Sublane packing for the dtype: 8 (f32), 16 (bf16), 32 (int8/fp8).
    sublane = max(8, 32 // dtype_bytes)

    # ~4 MiB per operand tile -> (in + out) * 2 pipeline buffers ~= 16 MiB VMEM.
    target_tile_bytes = 4 * 1024 * 1024
    block_rows = (target_tile_bytes // (lane_w * dtype_bytes)) // sublane * sublane
    block_rows = max(sublane, block_rows)

    if block_rows >= rows:
        if rows >= 2 * sublane:
            # Force >= 2 grid steps so the parallel grid shards across both
            # TensorCores on v7x instead of leaving half the chip idle.
            block_rows = pl.cdiv(pl.cdiv(rows, 2), sublane) * sublane
        else:
            # Too small to split on sublane boundaries: single full-extent block
            # (block == full array dim is always a legal block shape).
            block_rows = rows

    grid = (pl.cdiv(rows, block_rows),)  # partial final block is auto-masked

    x2d = x.reshape(rows, lane_w)  # contiguous reshape: no copy

    out2d = pl.pallas_call(
        _scale_kernel,
        out_shape=jax.ShapeDtypeStruct((rows, lane_w), orig_dtype),
        grid_spec=pl.GridSpec(
            grid=grid,
            in_specs=[
                pl.BlockSpec(memory_space=pltpu.SMEM),  # scale parameter (f32)
                pl.BlockSpec((block_rows, lane_w), lambda i: (i, 0)),
            ],
            out_specs=pl.BlockSpec((block_rows, lane_w), lambda i: (i, 0)),
        ),
        compiler_params=pltpu.CompilerParams(
            dimension_semantics=("parallel",),
            # v5e's scoped-VMEM default is 16 MiB, so this override is
            # load-bearing for the 4 MiB tiles; stays well under v7x's 64 MiB
            # physical VMEM per TensorCore.
            vmem_limit_bytes=40 * 1024 * 1024,
        ),
        # Default double-buffering (Buffered(2)) is intentional: the kernel is
        # HBM-bound, so deeper buffering only steals VMEM from the tile size.
    )(scale_f32, x2d)

    return out2d.reshape(orig_shape)


if __name__ == "__main__":
    key = jax.random.PRNGKey(0)
    # NCHW input, small shapes: batch=2, channels=4, spatial=16x16
    x = jax.random.normal(key, (2, 4, 16, 16), dtype=jnp.float32)

    # Deterministic parameter init (nn.Parameter(torch.FloatTensor([init_value])))
    init_value = 1.5
    scale = jnp.array([init_value], dtype=jnp.float32)

    # Force the Pallas path on the small demo input so the kernel is exercised.
    out_kernel = scale_forward(x, scale, min_pallas_bytes=0)
    out_kernel = jax.block_until_ready(out_kernel)

    # Default path (small-input bypass -> fused plain-JAX multiply).
    out_bypass = jax.block_until_ready(scale_forward(x, scale))

    # Correctness check against plain-JAX reference.
    ref = x * scale[0]
    assert out_kernel.shape == x.shape and out_kernel.dtype == x.dtype
    assert jnp.allclose(out_kernel, ref, atol=1e-6, rtol=1e-6)
    assert jnp.allclose(out_bypass, ref, atol=1e-6, rtol=1e-6)

    print("KERNEL_OK")
</pallas_src>

<mosaic_0001>
module attributes {stable_mosaic.version = 11 : i64} {
  func.func @_scale_kernel(%arg0: i32, %arg1: memref<1xf32, #tpu.memory_space<smem>>, %arg2: memref<1x2048xf32, #tpu.memory_space<vmem>>, %arg3: memref<1x2048xf32, #tpu.memory_space<vmem>>) attributes {dimension_semantics = [#tpu.dimension_semantics<parallel>], iteration_bounds = array<i64: 1>, scalar_prefetch = 0 : i64, scratch_operands = 0 : i64, tpu.core_type = #tpu.core_type<tc>, window_params = [{transform_indices = @transform_0, window_bounds = array<i64: 1>}, {transform_indices = @transform_1, window_bounds = array<i64: 1, 2048>}, {transform_indices = @transform_2, window_bounds = array<i64: 1, 2048>}]} {
    %c0 = arith.constant 0 : index
    %c0_0 = arith.constant 0 : index
    %0 = vector.load %arg2[%c0, %c0_0] : memref<1x2048xf32, #tpu.memory_space<vmem>>, vector<1x2048xf32>
    %c0_1 = arith.constant 0 : index
    %1 = memref.load %arg1[%c0_1] : memref<1xf32, #tpu.memory_space<smem>>
    %2 = vector.broadcast %1 : f32 to vector<1x2048xf32>
    %3 = arith.mulf %0, %2 : vector<1x2048xf32>
    %c0_2 = arith.constant 0 : index
    %c0_3 = arith.constant 0 : index
    %4 = vector.load %arg3[%c0_2, %c0_3] : memref<1x2048xf32, #tpu.memory_space<vmem>>, vector<1x2048xf32>
    tpu.vector_store %arg3[%c0_2, %c0_3], %3 {strides = array<i32>} : memref<1x2048xf32, #tpu.memory_space<vmem>>, vector<1x2048xf32>,
    return
  }
  func.func @transform_0(%arg0: i32) -> i32 {
    %c0_i32 = arith.constant 0 : i32
    %c0_i32_0 = arith.constant 0 : i32
    return %c0_i32 : i32
  }
  func.func @transform_1(%arg0: i32) -> (i32, i32) {
    %c0_i32 = arith.constant 0 : i32
    %c0_i32_0 = arith.constant 0 : i32
    return %arg0, %c0_i32 : i32, i32
  }
  func.func @transform_2(%arg0: i32) -> (i32, i32) {
    %c0_i32 = arith.constant 0 : i32
    %c0_i32_0 = arith.constant 0 : i32
    return %arg0, %c0_i32 : i32, i32
  }
}

</mosaic_0001>

<llo_original>
// kernel: tpu_custom_call.1
$region0: #{tpu_custom_call.1}
  #allocation0 [shape = 'u32[]', space=smem, size = 0x4, offset = 0x4, fixed_abs, tag = 'smem constant byte address 0x4 - core index']
  #allocation1 [shape = 'u32[72,128]{1,0:T(1,128)}', space=vmem, size = 0x9000, scoped, tag = 'internal scratch']
  #allocation2 [shape = 'f32[1]{0:T(128)S(6)}', space=smem, size = 0x200, scoped, tag = 'scoped memory for tpu_custom_call.1']
  %s0 = inlined_call_operand.<no memory space> [shape: f32[1], index: 0, kind: input, shape index: {}]
  %s1 = inlined_call_operand.hbm [shape: f32[1,2048], index: 1, kind: input, shape index: {}]
  %s2 = inlined_call_operand.hbm [shape: f32[1,2048], index: 2, kind: output, shape index: {}]
  %s3 = sld [smem:[#allocation0]]
  $region22: #{tpu_custom_call.1} parent=0
    _
  %s5 = ssub.s32 1, %s3
  %s6 = scalar_select 0, %s5, %s3
  %7 = sst [smem:[#allocation2]] %s0
  $region1: #{tpu_custom_call.1} parent=0
    #allocation3 [shape = 'u8[8192]{0}', space=vmem, size = 0x2000, scoped, tag = 'input window, operand 1, single buffered']
    #allocation4 [shape = 's32[1]{0}', space=sflag, size = 0x4, scoped, tag = 'scoped memory for tpu_custom_call.1']
    #allocation5 [shape = 's32[1]{0}', space=sflag, size = 0x4, scoped, tag = 'scoped memory for tpu_custom_call.1']
    #allocation6 [shape = 'u8[8192]{0}', space=vmem, size = 0x2000, scoped, tag = 'output window, operand 0, single buffered']
    %8 = vsyncpa [#allocation4], 0
    %9 = vsyncpa [#allocation5], 0
    // Predicated region
    $region2: #{tpu_custom_call.1} parent=1 // pred_check
      _
    $region3: #{tpu_custom_call.1} parent=1 // pred_check_branch
      %11 = sbr.rel (0) target = $region5
    $region4: #{tpu_custom_call.1} parent=1 // pred_region
      _
    $region5: #{tpu_custom_call.1} parent=1 // pred_fallthru
      _
    // Predicated region
    $region6: #{tpu_custom_call.1} parent=1 // pred_check
      _
    $region7: #{tpu_custom_call.1} parent=1 // pred_check_branch
      %13 = sbr.rel (0) target = $region9
    $region8: #{tpu_custom_call.1} parent=1 // pred_region
      %15 = vsyncadd [#allocation4], 0
      %s17 = sshll.u32 %s1, 4
      %s18 = int_to_ptr.hbm [resolvable:$true] %s17
      %s19 = sshll.u32 [#allocation3], 4
      %s20 = int_to_ptr.vmem [resolvable:$true] %s19
      %22 = dma.hbm_to_vmem [thread:$0]  %s18, 256, %s20, [#allocation4]
    $region9: #{tpu_custom_call.1} parent=1 // pred_fallthru
      _
    // Predicated region
    $region10: #{tpu_custom_call.1} parent=1 // pred_check
      _
    $region11: #{tpu_custom_call.1} parent=1 // pred_check_branch
      %24 = sbr.rel (0) target = $region13
    $region12: #{tpu_custom_call.1} parent=1 // pred_region
      %26 = dma.done [#allocation4], 256
    $region13: #{tpu_custom_call.1} parent=1 // pred_fallthru
      _
    %v27 = vld [vmem:[#allocation3] sm:$0xff]
    %v28 = vld [vmem:[#allocation3 + $0x8] sm:$0xff]
    %s29 = sld [smem:[#allocation2]]
    %v30 = vstv %s29
    %v31 = vmul.f32 %v27, %v30
    %v32 = vmul.f32 %v28, %v30
    %33 = vst [vmem:[#allocation6] sm:$0xff] %v31
    %34 = vst [vmem:[#allocation6 + $0x8] sm:$0xff] %v32
    // Predicated region
    $region14: #{tpu_custom_call.1} parent=1 // pred_check
      _
    $region15: #{tpu_custom_call.1} parent=1 // pred_check_branch
      %36 = sbr.rel (0) target = $region17
    $region16: #{tpu_custom_call.1} parent=1 // pred_region
      %38 = vsyncadd [#allocation5], 0
      %s40 = sshll.u32 [#allocation6], 4
      %s41 = int_to_ptr.vmem [resolvable:$true] %s40
      %s42 = sshll.u32 %s2, 4
      %s43 = int_to_ptr.hbm [resolvable:$true] %s42
      %45 = dma.vmem_to_hbm [thread:$0]  %s41, 256, %s43, [#allocation5]
    $region17: #{tpu_custom_call.1} parent=1 // pred_fallthru
      _
    // Predicated region
    $region18: #{tpu_custom_call.1} parent=1 // pred_check
      _
    $region19: #{tpu_custom_call.1} parent=1 // pred_check_branch
      %47 = sbr.rel (0) target = $region21
    $region20: #{tpu_custom_call.1} parent=1 // pred_region
      %49 = dma.done [#allocation5], 256
    $region21: #{tpu_custom_call.1} parent=1 // pred_fallthru
      _
    %50 = vsyncpa [#allocation4], 1
    %51 = vsyncpa [#allocation5], 1

</llo_original>
